<compile_context>
chip_gen: v5e
topology: v5e:2x2
jax: 0.10.0
libtpu: 0.0.40
codegen_flags: <defaults>
</compile_context>

<pallas_src>
import math

import jax
import jax.numpy as jnp
from jax.experimental import pallas as pl
from jax.experimental.pallas import tpu as pltpu


def _round_up(x, m):
    return (x + m - 1) // m * m


# --------------------------- parameter packing --------------------------------
def pack_params(W1, b1, W2, b2, W3, b3):
    """Pack torch-layout Linear params into one (rows, H) f32 VMEM operand
    plus a (1, 1) SMEM scalar.

    Torch layouts: W1 (H, F), b1 (H,), W2 (H, H), b2 (H,), W3 (1, H), b3 (1,).
    Weights are stored pre-transposed (in, out) so the kernel computes x @ W.
    Every segment starts on an 8-row boundary (sublane-aligned static slices).
    Call this once at init time, not per forward call.
    """
    H, F = W1.shape
    o_w1 = 0
    o_b1 = _round_up(F, 8)
    o_w2 = o_b1 + 8
    o_b2 = o_w2 + _round_up(H, 8)
    o_w3 = o_b2 + 8
    rows = o_w3 + 8

    packed = jnp.zeros((rows, H), jnp.float32)
    packed = packed.at[o_w1:o_w1 + F, :].set(W1.T.astype(jnp.float32))   # (F, H)
    packed = packed.at[o_b1, :].set(b1.astype(jnp.float32))              # (H,)
    packed = packed.at[o_w2:o_w2 + H, :].set(W2.T.astype(jnp.float32))   # (H, H)
    packed = packed.at[o_b2, :].set(b2.astype(jnp.float32))              # (H,)
    packed = packed.at[o_w3, :].set(W3.reshape(H).astype(jnp.float32))   # w3^T row
    b3_smem = jnp.asarray(b3, jnp.float32).reshape(1, 1)

    offsets = dict(w1=o_w1, b1=o_b1, w2=o_w2, b2=o_b2, w3=o_w3)
    return packed, b3_smem, offsets


# ------------------------------- kernel ----------------------------------------
def _make_kernel(F, H, offsets):
    o_w1, o_b1 = offsets["w1"], offsets["b1"]
    o_w2, o_b2 = offsets["w2"], offsets["b2"]
    o_w3 = offsets["w3"]

    def kernel(x_ref, p_ref, b3_ref, out_ref):
        x = x_ref[...]                                  # (TM, F) f32

        # Static, sublane-aligned views into the single packed-params block.
        w1 = p_ref[o_w1:o_w1 + F, :]                    # (F, H)
        b1 = p_ref[o_b1:o_b1 + 1, :]                    # (1, H)
        w2 = p_ref[o_w2:o_w2 + H, :]                    # (H, H)
        b2 = p_ref[o_b2:o_b2 + 1, :]                    # (1, H)
        w3 = p_ref[o_w3:o_w3 + 1, :]                    # (1, H)   (w3 transposed)
        b3 = b3_ref[0, 0]                               # scalar from SMEM

        # Linear(F->H) + ReLU
        h = jnp.maximum(
            jnp.dot(x, w1, preferred_element_type=jnp.float32) + b1, 0.0)
        # Linear(H->H) + ReLU
        h = jnp.maximum(
            jnp.dot(h, w2, preferred_element_type=jnp.float32) + b2, 0.0)
        # forward()'s extra F.relu(features) is identity here (h >= 0 already).

        # Linear(H->1) head as multiply + lane reduction (avoids a 1-column
        # MXU pass), then scalar bias add.
        out_ref[...] = jnp.sum(h * w3, axis=-1, keepdims=True) + b3   # (TM, 1)

    return kernel


# ------------------------------- wrapper ----------------------------------------
def disturbance_predictor(state, packed, b3_smem, offsets, *, tm_max=512):
    """state: (..., F) -> scores: (...)  (last feature dim consumed / squeezed)."""
    *lead, F = state.shape
    H = packed.shape[1]
    M = math.prod(lead) if lead else 1
    x2d = state.reshape(M, F).astype(jnp.float32)

    # Row-tile: multiple of 8 sublanes, capped so double-buffered x tiles plus
    # the (TM, H) intermediates stay far under every chip's scoped-VMEM limit.
    TM = min(tm_max, _round_up(M, 8))
    M_pad = _round_up(M, TM)
    if M_pad != M:
        x2d = jnp.pad(x2d, ((0, M_pad - M), (0, 0)))
    grid = (M_pad // TM,)

    kernel = _make_kernel(F, H, offsets)

    flops = 2 * M_pad * (F * H + H * H + H)
    bytes_accessed = (x2d.size + packed.size + M_pad + 1) * 4

    out = pl.pallas_call(
        kernel,
        out_shape=jax.ShapeDtypeStruct((M_pad, 1), jnp.float32),
        grid=grid,
        in_specs=[
            # x: moving (TM, F) tile along the grid
            pl.BlockSpec((TM, F), lambda i: (i, 0)),
            # packed params: constant index -> loaded once, VMEM-resident
            pl.BlockSpec((packed.shape[0], H), lambda i: (0, 0)),
            # b3 scalar lives in SMEM (no padded VMEM tile, no extra DMA)
            pl.BlockSpec(memory_space=pltpu.MemorySpace.SMEM),
        ],
        out_specs=pl.BlockSpec((TM, 1), lambda i: (i, 0)),
        compiler_params=pltpu.CompilerParams(
            dimension_semantics=("parallel",)),
        cost_estimate=pl.CostEstimate(
            flops=flops, transcendentals=0, bytes_accessed=bytes_accessed),
    )(x2d, packed, b3_smem)

    if M_pad == M:
        return out.reshape(tuple(lead))
    return out[:M, 0].reshape(tuple(lead))


# ------------------------------- self-check -------------------------------------
if __name__ == "__main__":
    B, S, F, H = 2, 8, 16, 32      # batch, num objects, obj_feature_dim, hidden_dim
    key = jax.random.PRNGKey(0)
    k_state, k1, k2, k3, k4, k5, k6 = jax.random.split(key, 7)

    def n(k, shape, s=0.1):
        return s * jax.random.normal(k, shape, jnp.float32)

    state = jax.random.normal(k_state, (B, S, F), jnp.float32)

    # torch-layout parameters (weight: (out, in), bias: (out,))
    W1, b1 = n(k1, (H, F)), n(k2, (H,))
    W2, b2 = n(k3, (H, H)), n(k4, (H,))
    W3, b3 = n(k5, (1, H)), n(k6, (1,))

    packed, b3_smem, offsets = pack_params(W1, b1, W2, b2, W3, b3)

    out = jax.block_until_ready(
        disturbance_predictor(state, packed, b3_smem, offsets))      # (B, S)

    # pure-JAX reference with identical semantics (y = x @ W.T + b)
    h = jax.nn.relu(state @ W1.T + b1)
    h = jax.nn.relu(h @ W2.T + b2)
    ref = (jax.nn.relu(h) @ W3.T + b3)[..., 0]
    ref = jax.block_until_ready(ref)

    assert out.shape == (B, S), out.shape
    assert jnp.allclose(out, ref, atol=1e-4, rtol=1e-4), (
        float(jnp.max(jnp.abs(out - ref)))
    )
    print("KERNEL_OK")
</pallas_src>

<mosaic_0001>
module attributes {stable_mosaic.version = 11 : i64} {
  func.func @kernel(%arg0: i32, %arg1: memref<16x16xf32, #tpu.memory_space<vmem>>, %arg2: memref<72x32xf32, #tpu.memory_space<vmem>>, %arg3: memref<1x1xf32, #tpu.memory_space<smem>>, %arg4: memref<16x1xf32, #tpu.memory_space<vmem>>) attributes {dimension_semantics = [#tpu.dimension_semantics<parallel>], iteration_bounds = array<i64: 1>, scalar_prefetch = 0 : i64, scratch_operands = 0 : i64, tpu.core_type = #tpu.core_type<tc>, window_params = [{transform_indices = @transform_0, window_bounds = array<i64: 16, 16>}, {pipeline_mode = #tpu.pipeline_mode<synchronous>, transform_indices = @transform_1, window_bounds = array<i64: 72, 32>}, {transform_indices = @transform_2, window_bounds = array<i64: 1, 1>}, {transform_indices = @transform_3, window_bounds = array<i64: 16, 1>}]} {
    %c0 = arith.constant 0 : index
    %c0_0 = arith.constant 0 : index
    %0 = vector.load %arg1[%c0, %c0_0] : memref<16x16xf32, #tpu.memory_space<vmem>>, vector<16x16xf32>
    %c0_1 = arith.constant 0 : index
    %c0_2 = arith.constant 0 : index
    %1 = vector.load %arg2[%c0_1, %c0_2] : memref<72x32xf32, #tpu.memory_space<vmem>>, vector<16x32xf32>
    %c16 = arith.constant 16 : index
    %c0_3 = arith.constant 0 : index
    %2 = vector.load %arg2[%c16, %c0_3] : memref<72x32xf32, #tpu.memory_space<vmem>>, vector<1x32xf32>
    %c24 = arith.constant 24 : index
    %c0_4 = arith.constant 0 : index
    %3 = vector.load %arg2[%c24, %c0_4] : memref<72x32xf32, #tpu.memory_space<vmem>>, vector<32x32xf32>
    %c56 = arith.constant 56 : index
    %c0_5 = arith.constant 0 : index
    %4 = vector.load %arg2[%c56, %c0_5] : memref<72x32xf32, #tpu.memory_space<vmem>>, vector<1x32xf32>
    %c64 = arith.constant 64 : index
    %c0_6 = arith.constant 0 : index
    %5 = vector.load %arg2[%c64, %c0_6] : memref<72x32xf32, #tpu.memory_space<vmem>>, vector<1x32xf32>
    %c0_7 = arith.constant 0 : index
    %c0_8 = arith.constant 0 : index
    %6 = memref.load %arg3[%c0_7, %c0_8] : memref<1x1xf32, #tpu.memory_space<smem>>
    %cst = arith.constant dense<0.000000e+00> : vector<16x32xf32>
    %7 = tpu.matmul %0, %1, %cst {dimension_numbers = #tpu.dot_dimension_numbers<[1], [0], [0], [1], [0, 0, 1, 1], [], []>} : vector<16x16xf32>, vector<16x32xf32>, vector<16x32xf32> -> vector<16x32xf32>
    %8 = vector.broadcast %2 : vector<1x32xf32> to vector<16x32xf32>
    %9 = arith.addf %7, %8 : vector<16x32xf32>
    %cst_9 = arith.constant 0.000000e+00 : f32
    %10 = vector.broadcast %cst_9 : f32 to vector<16x32xf32>
    %11 = arith.maximumf %9, %10 : vector<16x32xf32>
    %cst_10 = arith.constant dense<0.000000e+00> : vector<16x32xf32>
    %12 = tpu.matmul %11, %3, %cst_10 {dimension_numbers = #tpu.dot_dimension_numbers<[1], [0], [0], [1], [0, 0, 1, 1], [], []>} : vector<16x32xf32>, vector<32x32xf32>, vector<16x32xf32> -> vector<16x32xf32>
    %13 = vector.broadcast %4 : vector<1x32xf32> to vector<16x32xf32>
    %14 = arith.addf %12, %13 : vector<16x32xf32>
    %cst_11 = arith.constant 0.000000e+00 : f32
    %15 = vector.broadcast %cst_11 : f32 to vector<16x32xf32>
    %16 = arith.maximumf %14, %15 : vector<16x32xf32>
    %17 = vector.broadcast %5 : vector<1x32xf32> to vector<16x32xf32>
    %18 = arith.mulf %16, %17 : vector<16x32xf32>
    %cst_12 = arith.constant dense<0.000000e+00> : vector<16xf32>
    %19 = vector.multi_reduction <add>, %18, %cst_12 [1] : vector<16x32xf32> to vector<16xf32>
    %20 = vector.shape_cast %19 : vector<16xf32> to vector<16x1xf32>
    %21 = vector.broadcast %6 : f32 to vector<16x1xf32>
    %22 = arith.addf %20, %21 : vector<16x1xf32>
    %c0_13 = arith.constant 0 : index
    %c0_14 = arith.constant 0 : index
    %23 = vector.load %arg4[%c0_13, %c0_14] : memref<16x1xf32, #tpu.memory_space<vmem>>, vector<16x1xf32>
    tpu.vector_store %arg4[%c0_13, %c0_14], %22 {strides = array<i32>} : memref<16x1xf32, #tpu.memory_space<vmem>>, vector<16x1xf32>,
    return
  }
  func.func @transform_0(%arg0: i32) -> (i32, i32) {
    %c0_i32 = arith.constant 0 : i32
    %c0_i32_0 = arith.constant 0 : i32
    return %arg0, %c0_i32 : i32, i32
  }
  func.func @transform_1(%arg0: i32) -> (i32, i32) {
    %c0_i32 = arith.constant 0 : i32
    %c0_i32_0 = arith.constant 0 : i32
    %c0_i32_1 = arith.constant 0 : i32
    return %c0_i32, %c0_i32_0 : i32, i32
  }
  func.func @transform_2(%arg0: i32) -> (i32, i32) {
    %c0_i32 = arith.constant 0 : i32
    %c0_i32_0 = arith.constant 0 : i32
    %c0_i32_1 = arith.constant 0 : i32
    return %c0_i32, %c0_i32_0 : i32, i32
  }
  func.func @transform_3(%arg0: i32) -> (i32, i32) {
    %c0_i32 = arith.constant 0 : i32
    %c0_i32_0 = arith.constant 0 : i32
    return %arg0, %c0_i32 : i32, i32
  }
}

</mosaic_0001>

<llo_original>
// kernel: tpu_custom_call.1
$region0: #{tpu_custom_call.1}
  #allocation0 [shape = 'u32[]', space=smem, size = 0x4, offset = 0x4, fixed_abs, tag = 'smem constant byte address 0x4 - core index']
  #allocation1 [shape = 'u32[72,128]{1,0:T(1,128)}', space=vmem, size = 0x9000, scoped, tag = 'internal scratch']
  #allocation2 [shape = 'f32[1,1]{1,0:T(1,128)S(6)}', space=smem, size = 0x200, scoped, tag = 'scoped memory for tpu_custom_call.1']
  %s0 = inlined_call_operand.vmem [shape: f32[16,16], index: 0, kind: input, shape index: {}]
  %s1 = inlined_call_operand.vmem [shape: f32[72,32], index: 1, kind: input, shape index: {}]
  %s2 = inlined_call_operand.<no memory space> [shape: f32[1,1], index: 2, kind: input, shape index: {}]
  %s3 = inlined_call_operand.vmem [shape: f32[16,1], index: 3, kind: output, shape index: {}]
  %s4 = sld [smem:[#allocation0]]
  $region22: #{tpu_custom_call.1} parent=0
    _
  %s6 = ssub.s32 1, %s4
  %s7 = scalar_select 0, %s6, %s4
  %8 = sst [smem:[#allocation2]] %s2
  // Predicated region
  $region2: #{tpu_custom_call.1} parent=0 // pred_check
    _
  $region3: #{tpu_custom_call.1} parent=0 // pred_check_branch
    %10 = sbr.rel (0) target = $region5
  $region4: #{tpu_custom_call.1} parent=0 // pred_region
    _
  $region5: #{tpu_custom_call.1} parent=0 // pred_fallthru
    _
  // Predicated region
  $region6: #{tpu_custom_call.1} parent=0 // pred_check
    _
  $region7: #{tpu_custom_call.1} parent=0 // pred_check_branch
    %12 = sbr.rel (0) target = $region9
  $region8: #{tpu_custom_call.1} parent=0 // pred_region
    _
  $region9: #{tpu_custom_call.1} parent=0 // pred_fallthru
    _
  // Predicated region
  $region10: #{tpu_custom_call.1} parent=0 // pred_check
    _
  $region11: #{tpu_custom_call.1} parent=0 // pred_check_branch
    %14 = sbr.rel (0) target = $region13
  $region12: #{tpu_custom_call.1} parent=0 // pred_region
    _
  $region13: #{tpu_custom_call.1} parent=0 // pred_fallthru
    _
  %v15 = vld [vmem:[%s0] sm:$0xff]
  %v16 = vld [vmem:[%s0 + $0x8] sm:$0xff]
  %v17 = vld [vmem:[%s1] sm:$0xff]
  %v18 = vld [vmem:[%s1 + $0x8] sm:$0xff]
  %v19 = vld [vmem:[%s1 + $0x10] sm:$0x1]
  %v20 = vld [vmem:[%s1 + $0x18] sm:$0xff]
  %v21 = vld [vmem:[%s1 + $0x20] sm:$0xff]
  %v22 = vld [vmem:[%s1 + $0x28] sm:$0xff]
  %v23 = vld [vmem:[%s1 + $0x30] sm:$0xff]
  %v24 = vld [vmem:[%s1 + $0x38] sm:$0x1]
  %v25 = vld [vmem:[%s1 + $0x40] sm:$0x1]
  %s26 = sld [smem:[#allocation2]]
  %v27 = vperm.slane %v19, 0
  %vm28 = vcmask 130048
  %v30 = vsel %vm28, %v15, 0
  %v33 = vsel %vm28, %v16, 0
  %35 = vmatpush.msra.mxu0 0.0
  %36 = vmatpush.msra.mxu0 0.0
  %37 = vmatpush.msra.mxu0 0.0
  %38 = vmatpush.msra.mxu0 0.0
  %39 = vmatpush.msra.mxu0 0.0
  %40 = vmatpush.msra.mxu0 0.0
  %41 = vmatpush.msra.mxu0 0.0
  %42 = vmatpush.msra.mxu0 0.0
  %43 = vmatpush.msra.mxu0 0.0
  %44 = vmatpush.msra.mxu0 0.0
  %45 = vmatpush.msra.mxu0 0.0
  %46 = vmatpush.msra.mxu0 0.0
  %47 = vmatpush.msra.mxu0 0.0
  %48 = vmatpush.msra.mxu0 0.0
  %49 = vmatpush.msra.mxu0 %v18
  %50 = vmatpush.msra.mxu0 %v17
  %51 = vmatmul.f32.gmra.mxu0 %v30
  %v52 = vpop.f32.mrf.mxu0
  %v53 = vadd.f32 %v27, %v52
  %54 = vmatmul.f32.gmra.mxu0 %v33
  %v55 = vpop.f32.mrf.mxu0
  %v56 = vadd.f32 %v27, %v55
  %57 = vdwg.mxu0
  %v58 = vmax.f32 %v53, 0.0
  %v59 = vmax.f32 %v56, 0.0
  %v60 = vperm.slane %v24, 0
  %vm61 = vcmask 261120
  %v63 = vsel %vm61, %v58, 0
  %v66 = vsel %vm61, %v59, 0
  %68 = vmatpush.msra.mxu0 0.0
  %69 = vmatpush.msra.mxu0 0.0
  %70 = vmatpush.msra.mxu0 0.0
  %71 = vmatpush.msra.mxu0 0.0
  %72 = vmatpush.msra.mxu0 0.0
  %73 = vmatpush.msra.mxu0 0.0
  %74 = vmatpush.msra.mxu0 0.0
  %75 = vmatpush.msra.mxu0 0.0
  %76 = vmatpush.msra.mxu0 0.0
  %77 = vmatpush.msra.mxu0 0.0
  %78 = vmatpush.msra.mxu0 0.0
  %79 = vmatpush.msra.mxu0 0.0
  %80 = vmatpush.msra.mxu0 %v23
  %81 = vmatpush.msra.mxu0 %v22
  %82 = vmatpush.msra.mxu0 %v21
  %83 = vmatpush.msra.mxu0 %v20
  %84 = vmatmul.f32.gmra.mxu0 %v63
  %v85 = vpop.f32.mrf.mxu0
  %v86 = vadd.f32 %v60, %v85
  %87 = vmatmul.f32.gmra.mxu0 %v66
  %v88 = vpop.f32.mrf.mxu0
  %v89 = vadd.f32 %v60, %v88
  %90 = vdwg.mxu0
  %v91 = vmax.f32 %v86, 0.0
  %v92 = vmax.f32 %v89, 0.0
  %v93 = vperm.slane %v25, 0
  %v94 = vmul.f32 %v91, %v93
  %v95 = vmul.f32 %v92, %v93
  %v96 = vsel %vm61, %v94, 0.0
  %97 = vadd.xlane.f32.xlu0 %v96
  %v98 = vpop.xlane.xlu0 %97
  %v99 = vsel %vm61, %v95, 0.0
  %100 = vadd.xlane.f32.xlu0 %v99
  %v101 = vpop.xlane.xlu0 %100
  %v102 = vstv %s26
  %v103 = vadd.f32 %v98, %v102
  %v104 = vadd.f32 %v101, %v102
  %vm105 = vcmask 7168
  %106 = vst.msk [vmem:[%s3] sm:$0xff] %vm105, %v103
  %107 = vst.msk [vmem:[%s3 + $0x8] sm:$0xff] %vm105, %v104
  // Predicated region
  $region14: #{tpu_custom_call.1} parent=0 // pred_check
    _
  $region15: #{tpu_custom_call.1} parent=0 // pred_check_branch
    %109 = sbr.rel (0) target = $region17
  $region16: #{tpu_custom_call.1} parent=0 // pred_region
    _
  $region17: #{tpu_custom_call.1} parent=0 // pred_fallthru
    _
  // Predicated region
  $region18: #{tpu_custom_call.1} parent=0 // pred_check
    _
  $region19: #{tpu_custom_call.1} parent=0 // pred_check_branch
    %111 = sbr.rel (0) target = $region21
  $region20: #{tpu_custom_call.1} parent=0 // pred_region
    _
  $region21: #{tpu_custom_call.1} parent=0 // pred_fallthru
    _

</llo_original>
